<compile_context>
chip_gen: v6e
topology: v6e:2x2x1
jax: 0.10.0
libtpu: 0.0.40
codegen_flags: <defaults>
</compile_context>

<pallas_src>
import functools
import math

import jax
import jax.numpy as jnp
from jax.experimental import pallas as pl
from jax.experimental.pallas import tpu as pltpu


# ----------------------------------------------------------------------------
# Kernel 1: fused LorentzLinear  (matmul + bias + Lorentz re-normalization)
# ----------------------------------------------------------------------------
def _lorentz_linear_kernel(x_ref, w_ref, b_ref, o_ref, *,
                           scale_exp, compute_dtype, approx_recip):
    x = x_ref[...].astype(compute_dtype)                  # bf16 MXU inputs
    y = jnp.dot(x, w_ref[...], preferred_element_type=jnp.float32)
    y = y + b_ref[...]                                    # (TM, Dout), f32

    # Lorentz re-normalization in f32 (ratio-of-small-numbers sensitive).
    y0 = y[:, 0:1]
    time = jax.nn.sigmoid(y0) * scale_exp + 1.1           # (TM, 1)
    # sum of squares of the "narrow" part == sum(y^2) - y0^2 (no iota / selects)
    denom = jnp.maximum(jnp.sum(y * y, axis=-1, keepdims=True) - y0 * y0, 1e-8)
    coef = (time * time - 1.0) * pl.reciprocal(denom, approx=approx_recip)
    o_ref[...] = y * jnp.sqrt(coef)                       # dense (TM, Dout) store
    o_ref[:, 0:1] = time                                  # fix up the time column


def _pick_row_tile(m, target=256):
    """Largest row tile <= target that evenly divides m and is 8-aligned."""
    if m <= target:
        return m
    for t in range(target, 7, -8):
        if m % t == 0:
            return t
    return m  # fall back to untiled rows


def lorentz_linear(x2d, w, b, scale_exp, *,
                   compute_dtype=jnp.bfloat16, block_m=256):
    M, C = x2d.shape
    Dout = w.shape[1]
    tm = _pick_row_tile(M, block_m)
    # TODO(synk): for C > ~1024 add a K grid axis ("arbitrary") with an f32 VMEM
    # accumulator instead of keeping the whole (C, Dout) weight block resident.
    kernel = functools.partial(
        _lorentz_linear_kernel,
        scale_exp=float(scale_exp),
        compute_dtype=compute_dtype,
        approx_recip=(compute_dtype != jnp.float32),
    )
    return pl.pallas_call(
        kernel,
        out_shape=jax.ShapeDtypeStruct((M, Dout), jnp.float32),
        grid=(M // tm,),
        in_specs=[
            pl.BlockSpec((tm, C), lambda i: (i, 0)),       # activations (tiled)
            pl.BlockSpec((C, Dout), lambda i: (0, 0)),     # weight (resident)
            pl.BlockSpec((1, Dout), lambda i: (0, 0)),     # bias   (resident)
        ],
        out_specs=pl.BlockSpec((tm, Dout), lambda i: (i, 0)),
        compiler_params=pltpu.CompilerParams(
            dimension_semantics=("parallel",),             # shard rows over TCs
            vmem_limit_bytes=32 * 1024 * 1024),            # v7x-safe budget
    )(x2d, w.astype(compute_dtype), b.reshape(1, Dout).astype(jnp.float32))


# ----------------------------------------------------------------------------
# Kernel 2: per-batch all-heads attention, reads Q/K/V directly from (N, 3C)
# qkv activation and writes the (N, C) output block in final layout.
# ----------------------------------------------------------------------------
def _attn_kernel(qkv_ref, o_ref, *, num_heads, head_dim, attn_scale,
                 compute_dtype, approx_recip):
    C = num_heads * head_dim
    # qkv last dim is ordered [q|k|v] x [head] x [head_dim], matching
    # reshape(B, N, 3, H, hd).permute(2, 0, 3, 1, 4) in the PyTorch module.
    for h in range(num_heads):                            # static unroll over heads
        q = qkv_ref[0, :, h * head_dim:(h + 1) * head_dim]
        k = qkv_ref[0, :, C + h * head_dim:C + (h + 1) * head_dim]
        v = qkv_ref[0, :, 2 * C + h * head_dim:2 * C + (h + 1) * head_dim]
        q = (q * attn_scale).astype(compute_dtype)        # fold scale into q
        k = k.astype(compute_dtype)
        logits = jax.lax.dot_general(
            q, k, (((1,), (1,)), ((), ())),
            preferred_element_type=jnp.float32)            # (N, N) f32
        m = jnp.max(logits, axis=-1, keepdims=True)
        p = jnp.exp(logits - m)
        inv = pl.reciprocal(jnp.sum(p, axis=-1, keepdims=True),
                            approx=approx_recip)           # EUP slot
        p = (p * inv).astype(compute_dtype)
        # Output columns [h*hd, (h+1)*hd) == (attn @ v).transpose(1,2).reshape(B,N,C)
        o_ref[0, :, h * head_dim:(h + 1) * head_dim] = jnp.dot(
            p, v.astype(compute_dtype), preferred_element_type=jnp.float32)
    # TODO(synk): for N beyond ~1-2k tokens switch to a KV-tiled online-softmax
    # (flash) form; the dense (N, N) logits are fine at ViT token counts.


def mha_attention(qkv_bn3c, num_heads, head_dim, attn_scale, *,
                  compute_dtype=jnp.bfloat16):
    B, N, C3 = qkv_bn3c.shape
    C = num_heads * head_dim
    assert C3 == 3 * C
    kernel = functools.partial(
        _attn_kernel,
        num_heads=num_heads, head_dim=head_dim,
        attn_scale=float(attn_scale),
        compute_dtype=compute_dtype,
        approx_recip=(compute_dtype != jnp.float32),
    )
    return pl.pallas_call(
        kernel,
        out_shape=jax.ShapeDtypeStruct((B, N, C), jnp.float32),
        grid=(B,),
        in_specs=[pl.BlockSpec((1, N, C3), lambda b: (b, 0, 0))],
        out_specs=pl.BlockSpec((1, N, C), lambda b: (b, 0, 0)),   # lane-dense block
        compiler_params=pltpu.CompilerParams(
            dimension_semantics=("parallel",),
            vmem_limit_bytes=32 * 1024 * 1024),
    )(qkv_bn3c)


# ----------------------------------------------------------------------------
# Full Lorentz_attention forward (glue in plain JAX; only free reshapes)
# ----------------------------------------------------------------------------
def lorentz_attention_forward(x, params, *, compute_dtype=jnp.bfloat16):
    B, N, C = x.shape
    H = params["num_heads"]
    hd = C // H

    x2d = x.reshape(B * N, C)
    qkv = lorentz_linear(x2d, params["w_qkv"], params["b_qkv"],
                         params["lorentz_scale_exp"],
                         compute_dtype=compute_dtype)
    qkv = qkv.reshape(B, N, 3 * C)                         # free reshape, no transpose

    out = mha_attention(qkv, H, hd, params["attn_scale"],
                        compute_dtype=compute_dtype)       # (B, N, C) directly

    out = lorentz_linear(out.reshape(B * N, C),
                         params["w_proj"], params["b_proj"],
                         params["lorentz_scale_exp"],
                         compute_dtype=compute_dtype)
    return out.reshape(B, N, C)


# ----------------------------------------------------------------------------
# Pure-JAX f32 reference (mirrors the PyTorch module exactly, dropout p=0)
# ----------------------------------------------------------------------------
def _lorentz_linear_ref(x, w, b, scale_exp):
    y = x @ w + b
    time = jax.nn.sigmoid(y[..., :1]) * scale_exp + 1.1
    narrow = y[..., 1:]
    denom = jnp.maximum(jnp.sum(narrow * narrow, -1, keepdims=True), 1e-8)
    coef = (time * time - 1.0) / denom
    return jnp.concatenate([time, narrow * jnp.sqrt(coef)], -1)


def lorentz_attention_ref(x, params):
    B, N, C = x.shape
    H = params["num_heads"]
    hd = C // H
    qkv = _lorentz_linear_ref(x, params["w_qkv"], params["b_qkv"],
                              params["lorentz_scale_exp"])
    qkv = qkv.reshape(B, N, 3, H, hd).transpose(2, 0, 3, 1, 4)
    q, k, v = qkv[0], qkv[1], qkv[2]
    attn = jnp.einsum("bhnd,bhmd->bhnm", q, k) * params["attn_scale"]
    attn = jax.nn.softmax(attn, axis=-1)
    out = jnp.einsum("bhnm,bhmd->bhnd", attn, v)
    out = out.transpose(0, 2, 1, 3).reshape(B, N, C)
    return _lorentz_linear_ref(out, params["w_proj"], params["b_proj"],
                               params["lorentz_scale_exp"])


# ----------------------------------------------------------------------------
if __name__ == "__main__":
    B, N, C, H = 2, 8, 32, 8          # head_dim = 4
    head_dim = C // H

    key = jax.random.PRNGKey(0)
    k_x, k_wqkv, k_wproj, k_bproj = jax.random.split(key, 4)

    x = jax.random.normal(k_x, (B, N, C), jnp.float32)

    params = {
        "num_heads": H,
        # qkv LorentzLinear: Linear(C, 3C), qkv_bias=False
        "w_qkv": jax.random.normal(k_wqkv, (C, 3 * C), jnp.float32) / math.sqrt(C),
        "b_qkv": jnp.zeros((3 * C,), jnp.float32),
        # proj LorentzLinear: Linear(C, C), bias=True (default)
        "w_proj": jax.random.normal(k_wproj, (C, C), jnp.float32) / math.sqrt(C),
        "b_proj": 0.01 * jax.random.normal(k_bproj, (C,), jnp.float32),
        # LorentzLinear scale param is log(10) -> exp(.) = 10.0
        "lorentz_scale_exp": 10.0,
        # nn.Parameter(sqrt(head_dim))
        "attn_scale": math.sqrt(head_dim),
    }

    ref = lorentz_attention_ref(x, params)

    # Exact-precision path: f32 MXU inputs + exact reciprocals; tight check.
    out_f32 = lorentz_attention_forward(x, params, compute_dtype=jnp.float32)
    out_f32 = jax.block_until_ready(out_f32)
    assert out_f32.shape == (B, N, C)
    assert jnp.allclose(out_f32, ref, rtol=1e-3, atol=1e-3), (
        f"f32 max abs err {float(jnp.max(jnp.abs(out_f32 - ref)))}")

    # Production path (v6e/v7x guidance): bf16 MXU inputs, f32 accumulation,
    # f32 Lorentz renorm, EUP approx reciprocals. Checked against the
    # full-f32 PyTorch-faithful reference with a bf16-appropriate tolerance.
    out_bf16 = lorentz_attention_forward(x, params, compute_dtype=jnp.bfloat16)
    out_bf16 = jax.block_until_ready(out_bf16)
    assert out_bf16.shape == (B, N, C)
    assert jnp.allclose(out_bf16, ref, rtol=1e-1, atol=1e-1), (
        f"bf16 max abs err {float(jnp.max(jnp.abs(out_bf16 - ref)))}")

    print("KERNEL_OK")
</pallas_src>

<mosaic_0001>
module attributes {stable_mosaic.version = 11 : i64} {
  func.func @_lorentz_linear_kernel(%arg0: i32, %arg1: memref<16x32xf32, #tpu.memory_space<vmem>>, %arg2: memref<32x96xf32, #tpu.memory_space<vmem>>, %arg3: memref<1x96xf32, #tpu.memory_space<vmem>>, %arg4: memref<16x96xf32, #tpu.memory_space<vmem>>) attributes {dimension_semantics = [#tpu.dimension_semantics<parallel>], iteration_bounds = array<i64: 1>, scalar_prefetch = 0 : i64, scratch_operands = 0 : i64, tpu.core_type = #tpu.core_type<tc>, window_params = [{transform_indices = @transform_0, window_bounds = array<i64: 16, 32>}, {pipeline_mode = #tpu.pipeline_mode<synchronous>, transform_indices = @transform_1, window_bounds = array<i64: 32, 96>}, {pipeline_mode = #tpu.pipeline_mode<synchronous>, transform_indices = @transform_2, window_bounds = array<i64: 1, 96>}, {transform_indices = @transform_3, window_bounds = array<i64: 16, 96>}]} {
    %c0 = arith.constant 0 : index
    %c0_0 = arith.constant 0 : index
    %0 = vector.load %arg1[%c0, %c0_0] : memref<16x32xf32, #tpu.memory_space<vmem>>, vector<16x32xf32>
    %c0_1 = arith.constant 0 : index
    %c0_2 = arith.constant 0 : index
    %1 = vector.load %arg2[%c0_1, %c0_2] : memref<32x96xf32, #tpu.memory_space<vmem>>, vector<32x96xf32>
    %cst = arith.constant dense<0.000000e+00> : vector<16x96xf32>
    %2 = tpu.matmul %0, %1, %cst {dimension_numbers = #tpu.dot_dimension_numbers<[1], [0], [0], [1], [0, 0, 1, 1], [], []>} : vector<16x32xf32>, vector<32x96xf32>, vector<16x96xf32> -> vector<16x96xf32>
    %c0_3 = arith.constant 0 : index
    %c0_4 = arith.constant 0 : index
    %3 = vector.load %arg3[%c0_3, %c0_4] : memref<1x96xf32, #tpu.memory_space<vmem>>, vector<1x96xf32>
    %4 = vector.broadcast %3 : vector<1x96xf32> to vector<16x96xf32>
    %5 = arith.addf %2, %4 : vector<16x96xf32>
    %6 = vector.extract_strided_slice %5 {offsets = [0, 0], sizes = [16, 1], strides = [1, 1]} : vector<16x96xf32> to vector<16x1xf32>
    %7 = arith.negf %6 : vector<16x1xf32>
    %8 = math.exp %7 : vector<16x1xf32>
    %cst_5 = arith.constant 1.000000e+00 : f32
    %9 = vector.broadcast %cst_5 : f32 to vector<16x1xf32>
    %10 = arith.addf %9, %8 : vector<16x1xf32>
    %11 = arith.divf %9, %10 : vector<16x1xf32>
    %cst_6 = arith.constant 1.000000e+01 : f32
    %12 = vector.broadcast %cst_6 : f32 to vector<16x1xf32>
    %13 = arith.mulf %11, %12 : vector<16x1xf32>
    %cst_7 = arith.constant 1.100000e+00 : f32
    %14 = vector.broadcast %cst_7 : f32 to vector<16x1xf32>
    %15 = arith.addf %13, %14 : vector<16x1xf32>
    %16 = arith.mulf %5, %5 : vector<16x96xf32>
    %cst_8 = arith.constant dense<0.000000e+00> : vector<16xf32>
    %17 = vector.multi_reduction <add>, %16, %cst_8 [1] : vector<16x96xf32> to vector<16xf32>
    %18 = vector.shape_cast %17 : vector<16xf32> to vector<16x1xf32>
    %19 = arith.mulf %6, %6 : vector<16x1xf32>
    %20 = arith.subf %18, %19 : vector<16x1xf32>
    %cst_9 = arith.constant 9.99999993E-9 : f32
    %21 = vector.broadcast %cst_9 : f32 to vector<16x1xf32>
    %22 = arith.maximumf %20, %21 : vector<16x1xf32>
    %23 = arith.mulf %15, %15 : vector<16x1xf32>
    %cst_10 = arith.constant 1.000000e+00 : f32
    %24 = vector.broadcast %cst_10 : f32 to vector<16x1xf32>
    %25 = arith.subf %23, %24 : vector<16x1xf32>
    %26 = tpu.reciprocal %22 : vector<16x1xf32> -> vector<16x1xf32>
    %27 = arith.mulf %25, %26 : vector<16x1xf32>
    %28 = math.sqrt %27 : vector<16x1xf32>
    %29 = vector.broadcast %28 : vector<16x1xf32> to vector<16x96xf32>
    %30 = arith.mulf %5, %29 : vector<16x96xf32>
    %c0_11 = arith.constant 0 : index
    %c0_12 = arith.constant 0 : index
    %31 = vector.load %arg4[%c0_11, %c0_12] : memref<16x96xf32, #tpu.memory_space<vmem>>, vector<16x96xf32>
    tpu.vector_store %arg4[%c0_11, %c0_12], %30 {strides = array<i32>} : memref<16x96xf32, #tpu.memory_space<vmem>>, vector<16x96xf32>,
    %c0_13 = arith.constant 0 : index
    %c0_14 = arith.constant 0 : index
    %32 = vector.load %arg4[%c0_13, %c0_14] : memref<16x96xf32, #tpu.memory_space<vmem>>, vector<16x1xf32>
    tpu.vector_store %arg4[%c0_13, %c0_14], %15 {strides = array<i32>} : memref<16x96xf32, #tpu.memory_space<vmem>>, vector<16x1xf32>,
    return
  }
  func.func @transform_0(%arg0: i32) -> (i32, i32) {
    %c0_i32 = arith.constant 0 : i32
    %c0_i32_0 = arith.constant 0 : i32
    return %arg0, %c0_i32 : i32, i32
  }
  func.func @transform_1(%arg0: i32) -> (i32, i32) {
    %c0_i32 = arith.constant 0 : i32
    %c0_i32_0 = arith.constant 0 : i32
    %c0_i32_1 = arith.constant 0 : i32
    return %c0_i32, %c0_i32_0 : i32, i32
  }
  func.func @transform_2(%arg0: i32) -> (i32, i32) {
    %c0_i32 = arith.constant 0 : i32
    %c0_i32_0 = arith.constant 0 : i32
    %c0_i32_1 = arith.constant 0 : i32
    return %c0_i32, %c0_i32_0 : i32, i32
  }
  func.func @transform_3(%arg0: i32) -> (i32, i32) {
    %c0_i32 = arith.constant 0 : i32
    %c0_i32_0 = arith.constant 0 : i32
    return %arg0, %c0_i32 : i32, i32
  }
}

</mosaic_0001>

<llo_original>
// kernel: tpu_custom_call.1
$region0: #{tpu_custom_call.1}
  #allocation0 [shape = 'u32[]', space=smem, size = 0x4, offset = 0x4, fixed_abs, tag = 'smem constant byte address 0x4 - core index']
  #allocation1 [shape = 'u32[144,128]{1,0:T(1,128)}', space=vmem, size = 0x12000, scoped, tag = 'internal scratch']
  %s0 = inlined_call_operand.hbm [shape: f32[16,32], index: 0, kind: input, shape index: {}]
  %s1 = inlined_call_operand.hbm [shape: f32[32,96], index: 1, kind: input, shape index: {}]
  %s2 = inlined_call_operand.vmem [shape: f32[1,96], index: 2, kind: input, shape index: {}]
  %s3 = inlined_call_operand.hbm [shape: f32[16,96], index: 3, kind: output, shape index: {}]
  %s4 = sld [smem:[#allocation0]]
  $region30: #{tpu_custom_call.1} parent=0
    _
  %s6 = ssub.s32 1, %s4
  %s7 = scalar_select 0, %s6, %s4
  $region1: #{tpu_custom_call.1} parent=0
    #allocation2 [shape = 'u8[8192]{0}', space=vmem, size = 0x2000, scoped, tag = 'input window, operand 0, single buffered']
    #allocation3 [shape = 's32[1]{0}', space=sflag, size = 0x4, scoped, tag = 'scoped memory for tpu_custom_call.1']
    #allocation4 [shape = 's32[1]{0}', space=sflag, size = 0x4, scoped, tag = 'scoped memory for tpu_custom_call.1']
    #allocation5 [shape = 'u8[16384]{0}', space=vmem, size = 0x4000, scoped, tag = 'input window, operand 1, single buffered']
    #allocation6 [shape = 's32[1]{0}', space=sflag, size = 0x4, scoped, tag = 'scoped memory for tpu_custom_call.1']
    #allocation7 [shape = 'u8[8192]{0}', space=vmem, size = 0x2000, scoped, tag = 'output window, operand 0, single buffered']
    %8 = vsyncpa [#allocation3], 0
    %9 = vsyncpa [#allocation6], 0
    %10 = vsyncpa [#allocation4], 0
    // Predicated region
    $region2: #{tpu_custom_call.1} parent=1 // pred_check
      _
    $region3: #{tpu_custom_call.1} parent=1 // pred_check_branch
      %12 = sbr.rel (0) target = $region5
    $region4: #{tpu_custom_call.1} parent=1 // pred_region
      %s14 = ssub.s32 256, 256
      %15 = vsyncadd [#allocation3], %s14
      %s16 = sshll.u32 [#allocation2], 4
      %s17 = int_to_ptr.vmem [resolvable:$true] %s16
      %22 = dma.hbm_to_vmem [thread:$0]  %s0, 256, %s17, [#allocation3], 128, 128, 8
    $region5: #{tpu_custom_call.1} parent=1 // pred_fallthru
      _
    // Predicated region
    $region6: #{tpu_custom_call.1} parent=1 // pred_check
      _
    $region7: #{tpu_custom_call.1} parent=1 // pred_check_branch
      %24 = sbr.rel (0) target = $region9
    $region8: #{tpu_custom_call.1} parent=1 // pred_region
      %s26 = ssub.s32 512, 512
      %27 = vsyncadd [#allocation6], %s26
      %s28 = sshll.u32 [#allocation5], 4
      %s29 = int_to_ptr.vmem [resolvable:$true] %s28
      %34 = dma.hbm_to_vmem [thread:$0]  %s1, 512, %s29, [#allocation6], 128, 128, 8
    $region9: #{tpu_custom_call.1} parent=1 // pred_fallthru
      _
    // Predicated region
    $region10: #{tpu_custom_call.1} parent=1 // pred_check
      _
    $region11: #{tpu_custom_call.1} parent=1 // pred_check_branch
      %36 = sbr.rel (0) target = $region13
    $region12: #{tpu_custom_call.1} parent=1 // pred_region
      _
    $region13: #{tpu_custom_call.1} parent=1 // pred_fallthru
      _
    // Predicated region
    $region14: #{tpu_custom_call.1} parent=1 // pred_check
      _
    $region15: #{tpu_custom_call.1} parent=1 // pred_check_branch
      %38 = sbr.rel (0) target = $region17
    $region16: #{tpu_custom_call.1} parent=1 // pred_region
      %39 = dma.done [#allocation3], 256
    $region17: #{tpu_custom_call.1} parent=1 // pred_fallthru
      _
    // Predicated region
    $region18: #{tpu_custom_call.1} parent=1 // pred_check
      _
    $region19: #{tpu_custom_call.1} parent=1 // pred_check_branch
      %41 = sbr.rel (0) target = $region21
    $region20: #{tpu_custom_call.1} parent=1 // pred_region
      %42 = dma.done [#allocation6], 512
    $region21: #{tpu_custom_call.1} parent=1 // pred_fallthru
      _
    %v43 = vld [vmem:[#allocation2] sm:$0xff]
    %v44 = vld [vmem:[#allocation2 + $0x8] sm:$0xff]
    %v45 = vld [vmem:[#allocation5] sm:$0xff]
    %v46 = vld [vmem:[#allocation5 + $0x8] sm:$0xff]
    %v47 = vld [vmem:[#allocation5 + $0x10] sm:$0xff]
    %v48 = vld [vmem:[#allocation5 + $0x18] sm:$0xff]
    %v49 = vld [vmem:[%s2] sm:$0x1]
    %v51 = vlaneseq
    %v52 = vshrl.u32 %v51, 7
    %v53 = vsub.s32 0, %v52
    %v54 = vrot.slane %v49, %v53
    %vm56 = vcmask 261120
    %v58 = vsel %vm56, %v43, 0
    %v61 = vsel %vm56, %v44, 0
    %63 = vmatprep.subr.mxu0 0.0
    %64 = vmatpush1.msra.mxu0 0.0
    %65 = vmatprep.subr.mxu0 0.0
    %66 = vmatpush1.msra.mxu0 0.0
    %67 = vmatprep.subr.mxu0 0.0
    %68 = vmatpush1.msra.mxu0 0.0
    %69 = vmatprep.subr.mxu0 0.0
    %70 = vmatpush1.msra.mxu0 0.0
    %71 = vmatprep.subr.mxu0 0.0
    %72 = vmatpush1.msra.mxu0 0.0
    %73 = vmatprep.subr.mxu0 0.0
    %74 = vmatpush1.msra.mxu0 0.0
    %75 = vmatprep.subr.mxu0 0.0
    %76 = vmatpush1.msra.mxu0 0.0
    %77 = vmatprep.subr.mxu0 0.0
    %78 = vmatpush1.msra.mxu0 0.0
    %79 = vmatprep.subr.mxu0 0.0
    %80 = vmatpush1.msra.mxu0 0.0
    %81 = vmatprep.subr.mxu0 0.0
    %82 = vmatpush1.msra.mxu0 0.0
    %83 = vmatprep.subr.mxu0 0.0
    %84 = vmatpush1.msra.mxu0 0.0
    %85 = vmatprep.subr.mxu0 0.0
    %86 = vmatpush1.msra.mxu0 0.0
    %87 = vmatprep.subr.mxu0 0.0
    %88 = vmatpush1.msra.mxu0 %v48
    %89 = vmatprep.subr.mxu0 0.0
    %90 = vmatpush1.msra.mxu0 %v47
    %91 = vmatprep.subr.mxu0 0.0
    %92 = vmatpush1.msra.mxu0 %v46
    %93 = vmatprep.subr.mxu0 0.0
    %94 = vmatpush1.msra.mxu0 %v45
    %95 = vmatprep.subr.mxu0 0.0
    %96 = vmatpush2.msra.mxu0 0.0
    %97 = vmatprep.subr.mxu0 0.0
    %98 = vmatpush2.msra.mxu0 0.0
    %99 = vmatprep.subr.mxu0 0.0
    %100 = vmatpush2.msra.mxu0 0.0
    %101 = vmatprep.subr.mxu0 0.0
    %102 = vmatpush2.msra.mxu0 0.0
    %103 = vmatprep.subr.mxu0 0.0
    %104 = vmatpush2.msra.mxu0 0.0
    %105 = vmatprep.subr.mxu0 0.0
    %106 = vmatpush2.msra.mxu0 0.0
    %107 = vmatprep.subr.mxu0 0.0
    %108 = vmatpush2.msra.mxu0 0.0
    %109 = vmatprep.subr.mxu0 0.0
    %110 = vmatpush2.msra.mxu0 0.0
    %111 = vmatprep.subr.mxu0 0.0
    %112 = vmatpush2.msra.mxu0 0.0
    %113 = vmatprep.subr.mxu0 0.0
    %114 = vmatpush2.msra.mxu0 0.0
    %115 = vmatprep.subr.mxu0 0.0
    %116 = vmatpush2.msra.mxu0 0.0
    %117 = vmatprep.subr.mxu0 0.0
    %118 = vmatpush2.msra.mxu0 0.0
    %119 = vmatprep.subr.mxu0 0.0
    %120 = vmatpush2.msra.mxu0 0.0
    %121 = vmatprep.subr.mxu0 0.0
    %122 = vmatpush2.msra.mxu0 0.0
    %123 = vmatprep.subr.mxu0 0.0
    %124 = vmatpush2.msra.mxu0 0.0
    %125 = vmatprep.subr.mxu0 0.0
    %126 = vmatpush2.msra.mxu0 0.0
    %127 = vmatprep.mubr.f32.mxu0 0.0
    %128 = vmatmul.mubr.f32.gmra.mxu0 %v58
    %v129 = vpop.f32.mrf.mxu0
    %v130 = vadd.f32 %v54, %v129
    %v131 = vpop.f32.mrf.mxu0
    %132 = vmatprep.mubr.f32.mxu0 0.0
    %133 = vmatmul.mubr.f32.gmra.mxu0 %v61
    %v134 = vpop.f32.mrf.mxu0
    %v135 = vadd.f32 %v54, %v134
    %v136 = vpop.f32.mrf.mxu0
    %137 = vdwg.mxu0
    %v138 = vxor.u32 %v130, 2147483648
    %v139 = vxor.u32 %v135, 2147483648
    %v140 = vmul.f32 %v138, 1.442695
    %v141 = vpow.pop %v140
    %v142 = vmul.f32 %v139, 1.442695
    %v143 = vpow.pop %v142
    %v144 = vadd.f32 %v141, 1.0
    %v145 = vadd.f32 %v143, 1.0
    %v146 = vrcp.pop %v144
    %v147 = vmul.f32 1.0, %v146
    %v148 = vrcp.pop %v145
    %v149 = vmul.f32 1.0, %v148
    %v150 = vmul.f32 %v147, 10.0
    %v151 = vmul.f32 %v149, 10.0
    %v152 = vadd.f32 %v150, 1.1
    %v153 = vadd.f32 %v151, 1.1
    %v154 = vmul.f32 %v130, %v130
    %v155 = vmul.f32 %v135, %v135
    %vm156 = vcmask 785408
    %v157 = vsel %vm156, %v154, 0.0
    %158 = vadd.xlane.f32.xlu0 %v157
    %v159 = vpop.xlane.xlu0 %158
    %v160 = vsel %vm156, %v155, 0.0
    %161 = vadd.xlane.f32.xlu0 %v160
    %v162 = vpop.xlane.xlu0 %161
    %v163 = vsub.f32 %v159, %v154
    %v164 = vsub.f32 %v162, %v155
    %v165 = vmax.f32 %v163, 1e-08
    %v166 = vmax.f32 %v164, 1e-08
    %v167 = vmul.f32 %v152, %v152
    %v168 = vmul.f32 %v153, %v153
    %v169 = vsub.f32 %v167, 1.0
    %v170 = vsub.f32 %v168, 1.0
    %v171 = vrcp.pop %v165
    %v172 = vrcp.pop %v166
    %v173 = vmul.f32 %v169, %v171
    %v174 = vmul.f32 %v170, %v172
    %v175 = vrsqrt.pop %v173
    %v176 = vmul.f32 %v173, %v175
    %vm177 = vcmp.eq.f32.partialorder %v173, inf
    %v178 = vsel %vm177, %v173, %v176
    %vm179 = vcmp.eq.f32.partialorder %v173, 0.0
    %v180 = vand.u32 %v173, 2147483648
    %v181 = vsel %vm179, %v180, %v178
    %v182 = vrsqrt.pop %v174
    %v183 = vmul.f32 %v174, %v182
    %vm184 = vcmp.eq.f32.partialorder %v174, inf
    %v185 = vsel %vm184, %v174, %v183
    %vm186 = vcmp.eq.f32.partialorder %v174, 0.0
    %v187 = vand.u32 %v174, 2147483648
    %v188 = vsel %vm186, %v187, %v185
    %190 = vset.pattern.permute.xlu0 0
    %191 = vperm.xlu0 %190, %v181
    %v192 = vpop.permute.xlu0 %191
    %195 = vset.pattern.permute.xlu0 0
    %196 = vperm.xlu0 %195, %v188
    %v197 = vpop.permute.xlu0 %196
    %v199 = vmul.f32 %v130, %v192
    %v200 = vmul.f32 %v135, %v197
    %201 = vst.msk [vmem:[#allocation7] sm:$0xff] %vm156, %v199
    %202 = vst.msk [vmem:[#allocation7 + $0x8] sm:$0xff] %vm156, %v200
    %vm203 = vcmask 7168
    %204 = vst.msk [vmem:[#allocation7] sm:$0xff] %vm203, %v152
    %205 = vst.msk [vmem:[#allocation7 + $0x8] sm:$0xff] %vm203, %v153
    // Predicated region
    $region22: #{tpu_custom_call.1} parent=1 // pred_check
      _
    $region23: #{tpu_custom_call.1} parent=1 // pred_check_branch
      %207 = sbr.rel (0) target = $region25
    $region24: #{tpu_custom_call.1} parent=1 // pred_region
      %s209 = ssub.s32 256, 256
      %210 = vsyncadd [#allocation4], %s209
      %s211 = sshll.u32 [#allocation7], 4
      %s212 = int_to_ptr.vmem [resolvable:$true] %s211
      %217 = dma.vmem_to_hbm [thread:$0]  %s212, 256, %s3, [#allocation4], 128, 128, 8
    $region25: #{tpu_custom_call.1} parent=1 // pred_fallthru
      _
    // Predicated region
    $region26: #{tpu_custom_call.1} parent=1 // pred_check
      _
    $region27: #{tpu_custom_call.1} parent=1 // pred_check_branch
      %219 = sbr.rel (0) target = $region29
    $region28: #{tpu_custom_call.1} parent=1 // pred_region
      %220 = dma.done [#allocation4], 256
    $region29: #{tpu_custom_call.1} parent=1 // pred_fallthru
      _
    %221 = vsyncpa [#allocation3], 1
    %222 = vsyncpa [#allocation6], 1
    %223 = vsyncpa [#allocation4], 1

</llo_original>
